<compile_context>
chip_gen: v6e
topology: v6e:2x2x1
jax: 0.10.0
libtpu: 0.0.40
codegen_flags: <defaults>
</compile_context>

<pallas_src>
import jax
import jax.numpy as jnp
from jax.experimental import pallas as pl
from jax.experimental.pallas import tpu as pltpu


_LANES = 128
_MID_BLOCK_BYTES = 1 << 20    # input block budget, dim=int middle-axis path
_LAST_BLOCK_BYTES = 1 << 20   # input block budget, dim=int last-axis path
_FLAT_BLOCK_BYTES = 2 << 20   # input block budget, dim=None path
_CHUNK_ROWS = 256             # in-kernel row chunk (bounds live vregs, no spill)


def _prod(xs):
    p = 1
    for v in xs:
        p *= v
    return p


# ---------------------------------------------------------------------------
# dim=int, reduced axis in the middle: blocks (o_tile, K, s_tile), reduce K.
# ---------------------------------------------------------------------------
def _make_mid_kernel(k, is_float):
    def kernel(x_ref, o_ref):
        o_tile = x_ref.shape[0]
        s = x_ref.shape[2]
        ch_ids = jax.lax.broadcasted_iota(jnp.int32, (k, s), 0)  # channel ids
        for o in range(o_tile):                                  # static unroll (<=8)
            xo = x_ref[o]                                        # (K, S)
            m = jnp.max(xo, axis=0, keepdims=True)               # (1, S)
            hit = xo == m
            if is_float:
                hit = jnp.logical_or(hit, jnp.isnan(xo))         # NaN wins (torch/jnp)
            idx = jnp.min(jnp.where(hit, ch_ids, k), axis=0, keepdims=True)
            o_ref[pl.ds(o, 1), :] = idx.astype(o_ref.dtype)
    return kernel


def _argmax_middle(x, dim):
    shape = x.shape
    k = shape[dim]
    outer = _prod(shape[:dim])
    inner = _prod(shape[dim + 1:])
    itemsize = x.dtype.itemsize
    is_float = jnp.issubdtype(x.dtype, jnp.floating)

    x3 = x.reshape(outer, k, inner)
    inner_p = pl.cdiv(inner, _LANES) * _LANES
    if inner_p != inner:
        # Lane-pad the last axis; padded lanes compute garbage indices that are
        # sliced off below (they never mix with valid lanes: reduction is over K).
        x3 = jnp.pad(x3, ((0, 0), (0, 0), (0, inner_p - inner)))

    o_tile = 8 if outer >= 8 else outer
    if o_tile * k * _LANES * itemsize > _MID_BLOCK_BYTES:
        o_tile = 1
    # TODO(synk): K so large that even a (1, K, 128) block overflows VMEM would
    # need a K-tiled running max; unrealistic for argmax class dims.
    max_lanes = max(_LANES, _MID_BLOCK_BYTES // max(1, o_tile * k * itemsize))
    s_tile = min(inner_p, (max_lanes // _LANES) * _LANES)

    grid = (pl.cdiv(outer, o_tile), pl.cdiv(inner_p, s_tile))
    out2 = pl.pallas_call(
        _make_mid_kernel(k, is_float),
        out_shape=jax.ShapeDtypeStruct((outer, inner_p), jnp.int32),
        grid_spec=pltpu.PrefetchScalarGridSpec(
            num_scalar_prefetch=0,
            grid=grid,
            in_specs=[pl.BlockSpec((o_tile, k, s_tile), lambda o, s: (o, 0, s))],
            out_specs=pl.BlockSpec((o_tile, s_tile), lambda o, s: (o, s)),
        ),
        compiler_params=pltpu.CompilerParams(
            dimension_semantics=("parallel", "parallel")),
    )(x3)

    out = out2 if inner_p == inner else out2[:, :inner]
    return out.reshape(shape[:dim] + shape[dim + 1:])


# ---------------------------------------------------------------------------
# dim=int, reduced axis is the last (inner == 1): lane-dense (row_tile, K).
# ---------------------------------------------------------------------------
def _make_last_kernel(k, is_float):
    def kernel(x_ref, o_ref):
        rows = x_ref.shape[0]
        for c0 in range(0, rows, _CHUNK_ROWS):                   # static unroll
            ch = min(_CHUNK_ROWS, rows - c0)
            xc = x_ref[pl.ds(c0, ch), :]                         # (ch, K)
            col = jax.lax.broadcasted_iota(jnp.int32, (ch, k), 1)
            m = jnp.max(xc, axis=1, keepdims=True)               # (ch, 1)
            hit = xc == m
            if is_float:
                hit = jnp.logical_or(hit, jnp.isnan(xc))
            idx = jnp.min(jnp.where(hit, col, k), axis=1, keepdims=True)
            o_ref[pl.ds(c0, ch), :] = idx.astype(o_ref.dtype)
    return kernel


def _argmax_last(x, dim):
    shape = x.shape
    k = shape[dim]
    outer = _prod(shape[:dim]) * _prod(shape[dim + 1:])          # trailing dims all 1
    itemsize = x.dtype.itemsize
    is_float = jnp.issubdtype(x.dtype, jnp.floating)

    x2 = x.reshape(outer, k)
    kp = pl.cdiv(k, _LANES) * _LANES                             # VMEM lane footprint of K
    row_tile = max(8, _LAST_BLOCK_BYTES // (kp * itemsize))
    row_tile = min(row_tile, outer)
    if row_tile < outer:
        row_tile = max(8, (row_tile // 8) * 8)
    # TODO(synk): K so large that an (8, K) block overflows VMEM would need
    # K-tiling with a running max.

    out2 = pl.pallas_call(
        _make_last_kernel(k, is_float),
        out_shape=jax.ShapeDtypeStruct((outer, 1), jnp.int32),
        grid_spec=pltpu.PrefetchScalarGridSpec(
            num_scalar_prefetch=0,
            grid=(pl.cdiv(outer, row_tile),),
            in_specs=[pl.BlockSpec((row_tile, k), lambda i: (i, 0))],
            out_specs=pl.BlockSpec((row_tile, 1), lambda i: (i, 0)),
        ),
        compiler_params=pltpu.CompilerParams(dimension_semantics=("parallel",)),
    )(x2)
    return out2[:, 0].reshape(shape[:dim] + shape[dim + 1:])


# ---------------------------------------------------------------------------
# dim=None: two-stage global argmax over the flattened tensor.
# ---------------------------------------------------------------------------
def _make_flat_kernel(rows_total, rows_tile, pad_val, is_float):
    need_mask = (rows_total % rows_tile) != 0
    big = rows_tile * _LANES

    def kernel(x_ref, val_ref, idx_ref):
        step = pl.program_id(0)

        run_v = None      # (1, 128) running per-lane max
        run_r = None      # (1, 128) running per-lane first row (tile-local)
        for c0 in range(0, rows_tile, _CHUNK_ROWS):              # static unroll
            ch = min(_CHUNK_ROWS, rows_tile - c0)
            xc = x_ref[pl.ds(c0, ch), :]                         # (ch, 128)
            rows = jax.lax.broadcasted_iota(jnp.int32, (ch, 1), 0) + c0
            if need_mask:
                valid = (rows + step * rows_tile) < rows_total
                xc = jnp.where(valid, xc, pad_val)
            cm = jnp.max(xc, axis=0, keepdims=True)              # (1, 128)
            hit = xc == cm
            if is_float:
                hit = jnp.logical_or(hit, jnp.isnan(xc))
            cr = jnp.min(jnp.where(hit, rows, big), axis=0, keepdims=True)
            if run_v is None:
                run_v, run_r = cm, cr
            else:
                better = cm > run_v                              # strict: keeps earlier chunk on ties
                if is_float:
                    better = jnp.logical_or(
                        better,
                        jnp.logical_and(jnp.isnan(cm),
                                        jnp.logical_not(jnp.isnan(run_v))))
                run_v = jnp.where(better, cm, run_v)
                run_r = jnp.where(better, cr, run_r)

        # Fold the 128 lanes down to the tile max and its first flat position.
        m = jnp.max(run_v, axis=1, keepdims=True)                # (1, 1)
        lane = jax.lax.broadcasted_iota(jnp.int32, (1, _LANES), 1)
        hit = run_v == m
        if is_float:
            hit = jnp.logical_or(hit, jnp.isnan(run_v))
        local = jnp.min(jnp.where(hit, run_r * _LANES + lane, big),
                        axis=1, keepdims=True)                   # (1, 1)

        val_ref[...] = jnp.broadcast_to(m, val_ref.shape).astype(val_ref.dtype)
        idx_ref[...] = jnp.broadcast_to(local, idx_ref.shape)
    return kernel


def _argmax_flat(x):
    dtype = x.dtype
    total = x.size
    itemsize = dtype.itemsize
    is_float = jnp.issubdtype(dtype, jnp.floating)
    pad_val = float("-inf") if is_float else int(jnp.iinfo(dtype).min)

    flat = x.reshape(-1)
    rows_total = pl.cdiv(total, _LANES)
    padded = rows_total * _LANES
    if padded != total:
        # Only a (<128)-element pad so the flat view can be shaped (rows, 128);
        # the partial last row-tile is masked inside the kernel (no full copy).
        flat = jnp.pad(flat, (0, padded - total), constant_values=pad_val)
    x2 = flat.reshape(rows_total, _LANES)

    rows_tile = max(_CHUNK_ROWS,
                    (_FLAT_BLOCK_BYTES // (_LANES * itemsize) // _CHUNK_ROWS)
                    * _CHUNK_ROWS)
    rows_tile = min(rows_tile, rows_total)
    num_tiles = pl.cdiv(rows_total, rows_tile)

    out_v, out_i = pl.pallas_call(
        _make_flat_kernel(rows_total, rows_tile, pad_val, is_float),
        out_shape=(jax.ShapeDtypeStruct((num_tiles * 8, 1), dtype),
                   jax.ShapeDtypeStruct((num_tiles * 8, 1), jnp.int32)),
        grid_spec=pltpu.PrefetchScalarGridSpec(
            num_scalar_prefetch=0,
            grid=(num_tiles,),
            in_specs=[pl.BlockSpec((rows_tile, _LANES), lambda i: (i, 0))],
            out_specs=(pl.BlockSpec((8, 1), lambda i: (i, 0)),
                       pl.BlockSpec((8, 1), lambda i: (i, 0))),
        ),
        compiler_params=pltpu.CompilerParams(dimension_semantics=("parallel",)),
    )(x2)

    vals = out_v.reshape(num_tiles, 8)[:, 0]
    locs = out_i.reshape(num_tiles, 8)[:, 0]
    best = jnp.argmax(vals)                  # tiny stage-2 reduce (first occurrence)
    # TODO(synk): torch returns int64; int32 overflows past 2**31 - 1 elements.
    return best.astype(jnp.int32) * jnp.int32(rows_tile * _LANES) + locs[best]


# ---------------------------------------------------------------------------
# Public API mirroring the PyTorch module.
# ---------------------------------------------------------------------------
def argmax(x, dim=None):
    """Pallas TPU equivalent of torch.argmax(x, dim=dim) (ArgMax.forward)."""
    x = jnp.asarray(x)
    if x.dtype == jnp.bool_:
        x = x.astype(jnp.int32)              # bool argmax: compare as 0/1
    if dim is None:
        return _argmax_flat(x)
    dim = dim % x.ndim
    inner = _prod(x.shape[dim + 1:])
    if inner == 1:
        return _argmax_last(x, dim)
    return _argmax_middle(x, dim)


class ArgMax:
    def __init__(self, dim=None):
        self.dim = dim

    def __call__(self, x):
        return argmax(x, self.dim)


if __name__ == "__main__":
    key = jax.random.PRNGKey(0)
    N, C, H, W = 2, 4, 16, 16
    x = jax.random.normal(key, (N, C, H, W), dtype=jnp.float32)

    # dim=1: per-pixel class argmax (segmentation_models_pytorch usage).
    out_c = jax.block_until_ready(argmax(x, dim=1))
    assert out_c.shape == (N, H, W)
    assert jnp.array_equal(out_c, jnp.argmax(x, axis=1).astype(out_c.dtype))

    # dim=2: middle-axis kernel with lane padding (inner=16 -> 128).
    out_h = jax.block_until_ready(argmax(x, dim=2))
    assert jnp.array_equal(out_h, jnp.argmax(x, axis=2).astype(out_h.dtype))

    # dim=-1: dedicated lane-dense last-axis kernel.
    out_w = jax.block_until_ready(argmax(x, dim=-1))
    assert jnp.array_equal(out_w, jnp.argmax(x, axis=-1).astype(out_w.dtype))

    # dim=None: global argmax over the flattened tensor (module default).
    out_g = jax.block_until_ready(argmax(x, dim=None))
    assert int(out_g) == int(jnp.argmax(x))

    print("KERNEL_OK")
</pallas_src>

<mosaic_0001>
module attributes {stable_mosaic.version = 11 : i64} {
  func.func @kernel(%arg0: i32, %arg1: i32, %arg2: memref<2x4x256xf32, #tpu.memory_space<vmem>>, %arg3: memref<2x256xi32, #tpu.memory_space<vmem>>) attributes {dimension_semantics = [#tpu.dimension_semantics<parallel>, #tpu.dimension_semantics<parallel>], iteration_bounds = array<i64: 1, 1>, scalar_prefetch = 0 : i64, scratch_operands = 0 : i64, tpu.core_type = #tpu.core_type<tc>, window_params = [{transform_indices = @transform_0, window_bounds = array<i64: 2, 4, 256>}, {transform_indices = @transform_1, window_bounds = array<i64: 2, 256>}]} {
    %0 = tpu.iota {dimensions = array<i32: 0>} : vector<4x256xi32>
    %c0 = arith.constant 0 : index
    %c0_0 = arith.constant 0 : index
    %c0_1 = arith.constant 0 : index
    %1 = vector.load %arg2[%c0, %c0_0, %c0_1] : memref<2x4x256xf32, #tpu.memory_space<vmem>>, vector<1x4x256xf32>
    %2 = vector.shape_cast %1 : vector<1x4x256xf32> to vector<4x256xf32>
    %cst = arith.constant dense<0xFF800000> : vector<256xf32>
    %3 = vector.multi_reduction <maximumf>, %2, %cst [0] : vector<4x256xf32> to vector<256xf32>
    %4 = vector.shape_cast %3 : vector<256xf32> to vector<1x256xf32>
    %5 = vector.broadcast %4 : vector<1x256xf32> to vector<4x256xf32>
    %6 = arith.cmpf oeq, %2, %5 : vector<4x256xf32>
    %7 = arith.cmpf one, %2, %2 : vector<4x256xf32>
    %8 = arith.ori %6, %7 : vector<4x256xi1>
    %c4_i32 = arith.constant 4 : i32
    %9 = vector.broadcast %c4_i32 : i32 to vector<4x256xi32>
    %10 = arith.select %8, %0, %9 : vector<4x256xi1>, vector<4x256xi32>
    %cst_2 = arith.constant dense<2147483647> : vector<256xi32>
    %11 = vector.multi_reduction <minsi>, %10, %cst_2 [0] : vector<4x256xi32> to vector<256xi32>
    %12 = vector.shape_cast %11 : vector<256xi32> to vector<1x256xi32>
    %c0_3 = arith.constant 0 : index
    %c0_4 = arith.constant 0 : index
    %13 = vector.load %arg3[%c0_3, %c0_4] : memref<2x256xi32, #tpu.memory_space<vmem>>, vector<1x256xi32>
    tpu.vector_store %arg3[%c0_3, %c0_4], %12 {strides = array<i32>} : memref<2x256xi32, #tpu.memory_space<vmem>>, vector<1x256xi32>,
    %c1 = arith.constant 1 : index
    %c0_5 = arith.constant 0 : index
    %c0_6 = arith.constant 0 : index
    %14 = vector.load %arg2[%c1, %c0_5, %c0_6] : memref<2x4x256xf32, #tpu.memory_space<vmem>>, vector<1x4x256xf32>
    %15 = vector.shape_cast %14 : vector<1x4x256xf32> to vector<4x256xf32>
    %cst_7 = arith.constant dense<0xFF800000> : vector<256xf32>
    %16 = vector.multi_reduction <maximumf>, %15, %cst_7 [0] : vector<4x256xf32> to vector<256xf32>
    %17 = vector.shape_cast %16 : vector<256xf32> to vector<1x256xf32>
    %18 = vector.broadcast %17 : vector<1x256xf32> to vector<4x256xf32>
    %19 = arith.cmpf oeq, %15, %18 : vector<4x256xf32>
    %20 = arith.cmpf one, %15, %15 : vector<4x256xf32>
    %21 = arith.ori %19, %20 : vector<4x256xi1>
    %c4_i32_8 = arith.constant 4 : i32
    %22 = vector.broadcast %c4_i32_8 : i32 to vector<4x256xi32>
    %23 = arith.select %21, %0, %22 : vector<4x256xi1>, vector<4x256xi32>
    %cst_9 = arith.constant dense<2147483647> : vector<256xi32>
    %24 = vector.multi_reduction <minsi>, %23, %cst_9 [0] : vector<4x256xi32> to vector<256xi32>
    %25 = vector.shape_cast %24 : vector<256xi32> to vector<1x256xi32>
    %c1_10 = arith.constant 1 : index
    %c0_11 = arith.constant 0 : index
    %26 = vector.load %arg3[%c1_10, %c0_11] : memref<2x256xi32, #tpu.memory_space<vmem>>, vector<1x256xi32>
    tpu.vector_store %arg3[%c1_10, %c0_11], %25 {strides = array<i32>} : memref<2x256xi32, #tpu.memory_space<vmem>>, vector<1x256xi32>,
    return
  }
  func.func @transform_0(%arg0: i32, %arg1: i32) -> (i32, i32, i32) {
    %c0_i32 = arith.constant 0 : i32
    %c0_i32_0 = arith.constant 0 : i32
    return %arg0, %c0_i32, %arg1 : i32, i32, i32
  }
  func.func @transform_1(%arg0: i32, %arg1: i32) -> (i32, i32) {
    %c0_i32 = arith.constant 0 : i32
    return %arg0, %arg1 : i32, i32
  }
}

</mosaic_0001>

<llo_original>
// kernel: tpu_custom_call.1
$region0: #{tpu_custom_call.1}
  #allocation0 [shape = 'u32[]', space=smem, size = 0x4, offset = 0x4, fixed_abs, tag = 'smem constant byte address 0x4 - core index']
  #allocation1 [shape = 'u32[144,128]{1,0:T(1,128)}', space=vmem, size = 0x12000, scoped, tag = 'internal scratch']
  %s0 = inlined_call_operand.hbm [shape: f32[2,4,256], index: 0, kind: input, shape index: {}]
  %s1 = inlined_call_operand.hbm [shape: s32[2,256], index: 1, kind: output, shape index: {}]
  %s2 = sld [smem:[#allocation0]]
  $region18: #{tpu_custom_call.1} parent=0
    _
  %s4 = ssub.s32 1, %s2
  %s5 = scalar_select 0, %s4, %s2
  $region1: #{tpu_custom_call.1} parent=0
    #allocation2 [shape = 'u8[8192]{0}', space=vmem, size = 0x2000, scoped, tag = 'input window, operand 0, single buffered']
    #allocation3 [shape = 's32[1]{0}', space=sflag, size = 0x4, scoped, tag = 'scoped memory for tpu_custom_call.1']
    #allocation4 [shape = 's32[1]{0}', space=sflag, size = 0x4, scoped, tag = 'scoped memory for tpu_custom_call.1']
    #allocation5 [shape = 'u8[2048]{0}', space=vmem, size = 0x800, scoped, tag = 'output window, operand 0, single buffered']
    %6 = vsyncpa [#allocation3], 0
    %7 = vsyncpa [#allocation4], 0
    // Predicated region
    $region2: #{tpu_custom_call.1} parent=1 // pred_check
      _
    $region3: #{tpu_custom_call.1} parent=1 // pred_check_branch
      %9 = sbr.rel (0) target = $region5
    $region4: #{tpu_custom_call.1} parent=1 // pred_region
      %s11 = ssub.s32 256, 256
      %12 = vsyncadd [#allocation3], %s11
      %s13 = sshll.u32 [#allocation2], 4
      %s14 = int_to_ptr.vmem [resolvable:$true] %s13
      %19 = dma.hbm_to_vmem [thread:$0]  %s0, 256, %s14, [#allocation3], 128, 128, 8
    $region5: #{tpu_custom_call.1} parent=1 // pred_fallthru
      _
    // Predicated region
    $region6: #{tpu_custom_call.1} parent=1 // pred_check
      _
    $region7: #{tpu_custom_call.1} parent=1 // pred_check_branch
      %21 = sbr.rel (0) target = $region9
    $region8: #{tpu_custom_call.1} parent=1 // pred_region
      %22 = dma.done [#allocation3], 256
    $region9: #{tpu_custom_call.1} parent=1 // pred_fallthru
      _
    %v23 = vlaneseq
    %v24 = vshrl.u32 %v23, 7
    %v25 = vld [vmem:[#allocation2] sm:$0xff]
    %v27 = vcombine.high %v25, %v25
    %vm29 = vcmask 1043456
    %v30 = vsel %vm29, %v25, -inf
    %v31 = vrot.slane %v30, 4
    %v32 = vmax.f32 %v30, %v31
    %v33 = vrot.slane %v32, 2
    %v34 = vmax.f32 %v32, %v33
    %v35 = vrot.slane %v34, 1
    %v36 = vmax.f32 %v34, %v35
    %v37 = vsel %vm29, %v27, -inf
    %v38 = vrot.slane %v37, 4
    %v39 = vmax.f32 %v37, %v38
    %v40 = vrot.slane %v39, 2
    %v41 = vmax.f32 %v39, %v40
    %v42 = vrot.slane %v41, 1
    %v43 = vmax.f32 %v41, %v42
    %v46 = vcombine.low %v36, %v43
    %vm48 = vcmp.eq.f32.partialorder %v25, %v46
    %vm49 = vcmp.ne.f32.partialorder %v25, %v25
    %vm50 = vmor %vm48, %vm49
    %v52 = vunpack.c.l.s4 839922192
    %v53 = vunpack.c.0.s8 %v52
    %v54 = vlaneseq
    %v55 = vshrl.u32 %v54, 7
    %v56 = vsub.s32 %v53, %v55
    %v57 = vrot.slane %v24, %v56
    %v58 = vsel %vm50, %v57, 4
    %v59 = vcombine.high %v58, %v58
    %v60 = vsel %vm29, %v58, 2147483647
    %v61 = vrot.slane %v60, 4
    %vm62 = vcmp.lt.s32.totalorder %v60, %v61
    %v63 = vsel %vm62, %v60, %v61
    %v64 = vrot.slane %v63, 2
    %vm65 = vcmp.lt.s32.totalorder %v63, %v64
    %v66 = vsel %vm65, %v63, %v64
    %v67 = vrot.slane %v66, 1
    %vm68 = vcmp.lt.s32.totalorder %v66, %v67
    %v69 = vsel %vm68, %v66, %v67
    %v70 = vsel %vm29, %v59, 2147483647
    %v71 = vrot.slane %v70, 4
    %vm72 = vcmp.lt.s32.totalorder %v70, %v71
    %v73 = vsel %vm72, %v70, %v71
    %v74 = vrot.slane %v73, 2
    %vm75 = vcmp.lt.s32.totalorder %v73, %v74
    %v76 = vsel %vm75, %v73, %v74
    %v77 = vrot.slane %v76, 1
    %vm78 = vcmp.lt.s32.totalorder %v76, %v77
    %v79 = vsel %vm78, %v76, %v77
    %v80 = vcombine.low %v69, %v79
    %v82 = vunpack.c.l.s4 1966171168
    %v83 = vunpack.c.0.s8 %v82
    %v84 = vlaneseq
    %v85 = vshrl.u32 %v84, 7
    %v86 = vsub.s32 %v83, %v85
    %v87 = vrot.slane %v80, %v86
    %v89 = vunpack.c.l.s4 1966171168
    %v90 = vunpack.c.0.s8 %v89
    %v91 = vlaneseq
    %v92 = vshrl.u32 %v91, 7
    %v93 = vsub.s32 %v90, %v92
    %v94 = vrot.slane %v87, %v93
    %v95 = vlaneseq
    %vm96 = vcmp.ge.s32.totalorder %v95, 0
    %vm97 = vcmp.lt.s32.totalorder %v95, 256
    %vm98 = vmand %vm96, %vm97
    %99 = vst.msk [vmem:[#allocation5] ss:$2 sm:$0x3] %vm98, %v94
    %s100 = scalar_lea.vmem [#allocation2], 8
    %v101 = vld [vmem:[%s100] sm:$0xff]
    %v103 = vcombine.high %v101, %v101
    %v105 = vsel %vm29, %v101, -inf
    %v106 = vrot.slane %v105, 4
    %v107 = vmax.f32 %v105, %v106
    %v108 = vrot.slane %v107, 2
    %v109 = vmax.f32 %v107, %v108
    %v110 = vrot.slane %v109, 1
    %v111 = vmax.f32 %v109, %v110
    %v112 = vsel %vm29, %v103, -inf
    %v113 = vrot.slane %v112, 4
    %v114 = vmax.f32 %v112, %v113
    %v115 = vrot.slane %v114, 2
    %v116 = vmax.f32 %v114, %v115
    %v117 = vrot.slane %v116, 1
    %v118 = vmax.f32 %v116, %v117
    %v121 = vcombine.low %v111, %v118
    %vm123 = vcmp.eq.f32.partialorder %v101, %v121
    %vm124 = vcmp.ne.f32.partialorder %v101, %v101
    %vm125 = vmor %vm123, %vm124
    %v126 = vsel %vm125, %v57, 4
    %v127 = vcombine.high %v126, %v126
    %v128 = vsel %vm29, %v126, 2147483647
    %v129 = vrot.slane %v128, 4
    %vm130 = vcmp.lt.s32.totalorder %v128, %v129
    %v131 = vsel %vm130, %v128, %v129
    %v132 = vrot.slane %v131, 2
    %vm133 = vcmp.lt.s32.totalorder %v131, %v132
    %v134 = vsel %vm133, %v131, %v132
    %v135 = vrot.slane %v134, 1
    %vm136 = vcmp.lt.s32.totalorder %v134, %v135
    %v137 = vsel %vm136, %v134, %v135
    %v138 = vsel %vm29, %v127, 2147483647
    %v139 = vrot.slane %v138, 4
    %vm140 = vcmp.lt.s32.totalorder %v138, %v139
    %v141 = vsel %vm140, %v138, %v139
    %v142 = vrot.slane %v141, 2
    %vm143 = vcmp.lt.s32.totalorder %v141, %v142
    %v144 = vsel %vm143, %v141, %v142
    %v145 = vrot.slane %v144, 1
    %vm146 = vcmp.lt.s32.totalorder %v144, %v145
    %v147 = vsel %vm146, %v144, %v145
    %v148 = vcombine.low %v137, %v147
    %v150 = vunpack.c.l.s4 1966171168
    %v151 = vunpack.c.0.s8 %v150
    %v152 = vlaneseq
    %v153 = vshrl.u32 %v152, 7
    %v154 = vsub.s32 %v151, %v153
    %v155 = vrot.slane %v148, %v154
    %v157 = vunpack.c.l.s4 1966171168
    %v158 = vunpack.c.0.s8 %v157
    %v159 = vlaneseq
    %v160 = vshrl.u32 %v159, 7
    %v161 = vsub.s32 %v158, %v160
    %v162 = vrot.slane %v155, %v161
    %s163 = scalar_lea.vmem [#allocation5], 1
    %164 = vst.msk [vmem:[%s163] ss:$2 sm:$0x3] %vm98, %v162
    // Predicated region
    $region10: #{tpu_custom_call.1} parent=1 // pred_check
      _
    $region11: #{tpu_custom_call.1} parent=1 // pred_check_branch
      %166 = sbr.rel (0) target = $region13
    $region12: #{tpu_custom_call.1} parent=1 // pred_region
      %s168 = ssub.s32 64, 64
      %169 = vsyncadd [#allocation4], %s168
      %s171 = sshll.u32 [#allocation5], 4
      %s172 = int_to_ptr.vmem [resolvable:$true] %s171
      %174 = dma.vmem_to_hbm [thread:$0]  %s172, 64, %s1, [#allocation4]
    $region13: #{tpu_custom_call.1} parent=1 // pred_fallthru
      _
    // Predicated region
    $region14: #{tpu_custom_call.1} parent=1 // pred_check
      _
    $region15: #{tpu_custom_call.1} parent=1 // pred_check_branch
      %176 = sbr.rel (0) target = $region17
    $region16: #{tpu_custom_call.1} parent=1 // pred_region
      %177 = dma.done [#allocation4], 64
    $region17: #{tpu_custom_call.1} parent=1 // pred_fallthru
      _
    %178 = vsyncpa [#allocation3], 1
    %179 = vsyncpa [#allocation4], 1

</llo_original>
